<compile_context>
chip_gen: v7x
topology: tpu7x:2x2x1
jax: 0.10.0
libtpu: 0.0.40
codegen_flags: <defaults>
</compile_context>

<pallas_src>
import functools

import numpy as np
import jax
import jax.numpy as jnp
from jax import lax
from jax.experimental import pallas as pl
from jax.experimental.pallas import tpu as pltpu

NUM_CLASSES = 1000           # inception_v3 output classes
NUM_CLASSES_PAD = 1024       # padded to a lane-friendly multiple of 128
STEM_CH = 128                # lane-dense synthetic stem width
KH = KW = 3                  # stem conv kernel size
K_REAL = KH * KW * 3         # im2col depth for a 3-channel 3x3 conv = 27
K_PAD = 32                   # per-position padded im2col depth (27 -> 32)
FOLD = 4                     # spatial positions folded per row -> K = 128 lanes
K_FOLD = FOLD * K_PAD        # 128  (lane-dense MXU contraction)
CO_FOLD = FOLD * STEM_CH     # 512  (block-diagonal stem output width)
NEG_BIG = -1e30              # masks padded class columns inside softmax
MAX_IMG_BLK = 8              # images batched per epilogue / accumulator block
TARGET_TM_F = 4096           # folded rows per spatial tile (= 16384 pixels)
ROW_CHUNK = 1024             # folded rows per in-kernel matmul chunk


def _round_up(x: int, m: int) -> int:
    return ((x + m - 1) // m) * m


# ----------------------------------------------------------------------------
# Fused kernel.
#   p_ref  : (TM_F, 128)            bf16  folded lane-dense im2col patch tile
#   wc_ref : (128, 512)             bf16  block-diagonal stem conv weights
#   wf_ref : (128, 1024)            f32   classifier weights
#   bf_ref : (1, 1024)              f32   classifier bias (+ baked pad mask)
#   o_ref  : (IMG_BLK, 1024)        f32   softmax probabilities (image block)
#   acc_ref: (IMG_BLK, 128)         f32   running per-image channel sums
# Grid: (num_img_blocks [parallel], IMG_BLK, num_spatial_tiles)
# ----------------------------------------------------------------------------
def _fused_kernel(p_ref, wc_ref, wf_ref, bf_ref, o_ref, acc_ref, *, inv_hw):
    i = pl.program_id(1)          # image index within the image block
    t = pl.program_id(2)          # spatial tile index

    @pl.when(jnp.logical_and(i == 0, t == 0))
    def _init():
        acc_ref[...] = jnp.zeros_like(acc_ref)

    tm_f = p_ref.shape[0]
    wc = wc_ref[...]                                      # (128, 512) bf16

    # Stem matmul in row chunks so the f32 intermediate stays ~2 MiB while the
    # DMA'd tile is large (amortizes grid-step overhead).
    csum = jnp.zeros((1, CO_FOLD), jnp.float32)
    for r0 in range(0, tm_f, ROW_CHUNK):
        sz = min(ROW_CHUNK, tm_f - r0)
        rows = p_ref[pl.ds(r0, sz), :]                    # (sz, 128) bf16
        stem = jnp.dot(rows, wc, preferred_element_type=jnp.float32)
        stem = jnp.maximum(stem, 0.0)                     # ReLU
        csum = csum + jnp.sum(stem, axis=0, keepdims=True)

    # Collapse the 4 folded position blocks -> per-channel sums (1, 128).
    sums = (csum[:, 0 * STEM_CH:1 * STEM_CH]
            + csum[:, 1 * STEM_CH:2 * STEM_CH]
            + csum[:, 2 * STEM_CH:3 * STEM_CH]
            + csum[:, 3 * STEM_CH:4 * STEM_CH])

    # One-hot accumulate into this image's row of the block accumulator
    # (static shapes only; no dynamic sublane indexing).
    img_blk = acc_ref.shape[0]
    onehot = (lax.broadcasted_iota(jnp.int32, (img_blk, 1), 0) == i)
    acc_ref[...] += onehot.astype(jnp.float32) * sums

    @pl.when(jnp.logical_and(i == pl.num_programs(1) - 1,
                             t == pl.num_programs(2) - 1))
    def _finalize():
        pooled = acc_ref[...] * inv_hw                    # (IMG_BLK, 128) f32 GAP
        logits = jnp.dot(pooled, wf_ref[...],
                         preferred_element_type=jnp.float32)  # (IMG_BLK, 1024)
        logits = logits + bf_ref[...]                     # bias + pad-class mask
        m = jnp.max(logits, axis=-1, keepdims=True)
        e = jnp.exp(logits - m)
        s = jnp.sum(e, axis=-1, keepdims=True)
        r = pl.reciprocal(s, approx=True)
        r = r * (2.0 - s * r)                             # one Newton step
        o_ref[...] = (e * r).astype(o_ref.dtype)


# ----------------------------------------------------------------------------
# Wrapper: NCHW -> NHWC, folded lane-dense im2col, tiling, pallas_call.
# ----------------------------------------------------------------------------
@jax.jit
def inception_forward(imgs, w_conv_bd, w_fc, b_fc):
    """imgs: NCHW float -> softmax probs (N, NUM_CLASSES)."""
    n, c, h, w = imgs.shape
    assert c == 3, "inception-style stem expects 3-channel input"
    m_total = h * w

    # Tiling: folded rows per tile (multiple of 16 for bf16 sublane packing).
    mf = _round_up(m_total, FOLD) // FOLD
    tm_f = min(TARGET_TM_F, _round_up(mf, 16))
    num_t = -(-mf // tm_f)
    img_blk = min(MAX_IMG_BLK, n)
    nb = -(-n // img_blk)
    n_pad = nb * img_blk

    # TODO(synk): build these patches inside the kernel from halo'ed NHWC row
    # tiles; currently XLA materializes ~10x the raw image bytes in HBM.
    x = jnp.transpose(imgs, (0, 2, 3, 1)).astype(jnp.bfloat16)      # NHWC bf16
    xp = jnp.pad(x, ((0, 0), (1, 1), (1, 1), (0, 0)))
    cols = [xp[:, dy:dy + h, dx:dx + w, :]
            for dy in range(KH) for dx in range(KW)]
    p = jnp.concatenate(cols, axis=-1)                               # (n,h,w,27)
    p = jnp.pad(p, ((0, 0), (0, 0), (0, 0), (0, K_PAD - K_REAL)))    # -> 32
    p = p.reshape(n, m_total, K_PAD)
    m_pad = num_t * tm_f * FOLD
    p = jnp.pad(p, ((0, n_pad - n), (0, m_pad - m_total), (0, 0)))
    # Fold 4 consecutive positions into one lane-dense 128-wide row.
    p = p.reshape(nb, img_blk, num_t, tm_f, K_FOLD)                  # bf16

    kernel = functools.partial(_fused_kernel, inv_hw=1.0 / float(m_total))

    probs_pad = pl.pallas_call(
        kernel,
        out_shape=jax.ShapeDtypeStruct((nb, img_blk, NUM_CLASSES_PAD),
                                       jnp.float32),
        grid_spec=pltpu.PrefetchScalarGridSpec(
            num_scalar_prefetch=0,
            grid=(nb, img_blk, num_t),
            in_specs=[
                pl.BlockSpec((None, None, None, tm_f, K_FOLD),
                             lambda b, i, t: (b, i, t, 0, 0)),
                pl.BlockSpec((K_FOLD, CO_FOLD), lambda b, i, t: (0, 0)),
                pl.BlockSpec((STEM_CH, NUM_CLASSES_PAD), lambda b, i, t: (0, 0)),
                pl.BlockSpec((1, NUM_CLASSES_PAD), lambda b, i, t: (0, 0)),
            ],
            out_specs=pl.BlockSpec((None, img_blk, NUM_CLASSES_PAD),
                                   lambda b, i, t: (b, 0, 0)),
            scratch_shapes=[pltpu.VMEM((img_blk, STEM_CH), jnp.float32)],
        ),
        compiler_params=pltpu.CompilerParams(
            dimension_semantics=("parallel", "arbitrary", "arbitrary"),
            vmem_limit_bytes=32 * 1024 * 1024),
    )(p, w_conv_bd, w_fc, b_fc)

    return probs_pad.reshape(n_pad, NUM_CLASSES_PAD)[:n, :NUM_CLASSES]


class InceptionScorePallas:
    """Mirrors InceptionScore: forward() appends softmax preds to self.preds."""

    def __init__(self, batch_size=32, resize=False):
        assert batch_size > 0
        self.batch_size = batch_size
        self.resize = resize
        # Deterministic synthetic parameters (stand-in for pretrained weights).
        k1, k2 = jax.random.split(jax.random.PRNGKey(0))
        wc = jax.random.normal(k1, (K_PAD, STEM_CH), jnp.float32) * 0.1
        wc = wc.at[K_REAL:, :].set(0.0)        # padded im2col rows are no-ops
        # Block-diagonal folded stem weight: 4 copies of wc on the diagonal.
        w_bd = jnp.zeros((K_FOLD, CO_FOLD), jnp.float32)
        for j in range(FOLD):
            w_bd = w_bd.at[j * K_PAD:(j + 1) * K_PAD,
                           j * STEM_CH:(j + 1) * STEM_CH].set(wc)
        self.w_conv_bd = w_bd.astype(jnp.bfloat16)
        # Classifier kept in f32 (pooled features stay f32 through the FC).
        w_fc = jax.random.normal(k2, (STEM_CH, NUM_CLASSES_PAD), jnp.float32) * 0.1
        self.w_fc = w_fc.at[:, NUM_CLASSES:].set(0.0)
        # FC bias with the padded-class mask baked in (-1e30 -> softmax prob 0).
        b_fc = jnp.zeros((1, NUM_CLASSES_PAD), jnp.float32)
        self.b_fc = b_fc.at[:, NUM_CLASSES:].set(NEG_BIG)
        self.clean()

    def clean(self):
        self.preds = np.zeros((0, NUM_CLASSES), dtype=np.float32)

    def get_pred(self, x):
        # resize=False (module default): Interpolate((299,299)) path skipped.
        return inception_forward(x, self.w_conv_bd, self.w_fc, self.b_fc)

    def forward(self, imgs):
        preds_imgs = self.get_pred(imgs)
        # Host-side (numpy) append, matching the torch module's
        # .data.cpu().numpy() + np.append.
        self.preds = np.concatenate(
            [self.preds, np.asarray(jax.device_get(preds_imgs))], axis=0)

    __call__ = forward


if __name__ == "__main__":
    key = jax.random.PRNGKey(0)
    imgs = jax.random.normal(key, (2, 3, 16, 16), jnp.float32)  # NCHW, like torch

    model = InceptionScorePallas(batch_size=32, resize=False)

    probs = jax.block_until_ready(model.get_pred(imgs))
    assert probs.shape == (2, NUM_CLASSES), probs.shape

    model(imgs)                         # appends softmax preds, like the module
    preds = model.preds
    assert preds.shape == (2, NUM_CLASSES), preds.shape
    row_sums = preds.sum(axis=1)
    assert np.all(np.abs(row_sums - 1.0) < 1e-4), row_sums
    assert np.all(preds >= 0.0)

    print("KERNEL_OK")
</pallas_src>

<mosaic_0001>
module attributes {stable_mosaic.version = 11 : i64} {
  func.func @_fused_kernel(%arg0: i32, %arg1: i32, %arg2: i32, %arg3: memref<1x1x1x64x128xbf16, #tpu.memory_space<vmem>>, %arg4: memref<128x512xbf16, #tpu.memory_space<vmem>>, %arg5: memref<128x1024xf32, #tpu.memory_space<vmem>>, %arg6: memref<1x1024xf32, #tpu.memory_space<vmem>>, %arg7: memref<1x2x1024xf32, #tpu.memory_space<vmem>>, %arg8: memref<2x128xf32, #tpu.memory_space<vmem>>) attributes {dimension_semantics = [#tpu.dimension_semantics<parallel>, #tpu.dimension_semantics<arbitrary>, #tpu.dimension_semantics<arbitrary>], iteration_bounds = array<i64: 1, 2, 1>, scalar_prefetch = 0 : i64, scratch_operands = 1 : i64, tpu.core_type = #tpu.core_type<tc>, window_params = [{transform_indices = @transform_0, window_bounds = array<i64: 1, 1, 1, 64, 128>}, {pipeline_mode = #tpu.pipeline_mode<synchronous>, transform_indices = @transform_1, window_bounds = array<i64: 128, 512>}, {pipeline_mode = #tpu.pipeline_mode<synchronous>, transform_indices = @transform_2, window_bounds = array<i64: 128, 1024>}, {pipeline_mode = #tpu.pipeline_mode<synchronous>, transform_indices = @transform_3, window_bounds = array<i64: 1, 1024>}, {transform_indices = @transform_4, window_bounds = array<i64: 1, 2, 1024>}]} {
    %c0_i32 = arith.constant 0 : i32
    %0 = arith.cmpi eq, %arg1, %c0_i32 : i32
    %c0_i32_0 = arith.constant 0 : i32
    %1 = arith.cmpi eq, %arg2, %c0_i32_0 : i32
    %2 = arith.andi %0, %1 : i1
    %3 = arith.extui %2 : i1 to i32
    %c0_i32_1 = arith.constant 0 : i32
    %4 = arith.cmpi ne, %3, %c0_i32_1 : i32
    scf.if %4 {
      %cst_17 = arith.constant 0.000000e+00 : f32
      %38 = vector.broadcast %cst_17 : f32 to vector<2x128xf32>
      %c0_18 = arith.constant 0 : index
      %c0_19 = arith.constant 0 : index
      %39 = vector.load %arg8[%c0_18, %c0_19] : memref<2x128xf32, #tpu.memory_space<vmem>>, vector<2x128xf32>
      tpu.vector_store %arg8[%c0_18, %c0_19], %38 {strides = array<i32>} : memref<2x128xf32, #tpu.memory_space<vmem>>, vector<2x128xf32>,
    } else {
    }
    %c0 = arith.constant 0 : index
    %c0_2 = arith.constant 0 : index
    %5 = vector.load %arg4[%c0, %c0_2] : memref<128x512xbf16, #tpu.memory_space<vmem>>, vector<128x512xbf16>
    %cst = arith.constant 0.000000e+00 : f32
    %6 = vector.broadcast %cst : f32 to vector<1x512xf32>
    %c0_3 = arith.constant 0 : index
    %c0_4 = arith.constant 0 : index
    %c0_5 = arith.constant 0 : index
    %c0_6 = arith.constant 0 : index
    %c0_7 = arith.constant 0 : index
    %7 = vector.load %arg3[%c0_3, %c0_4, %c0_5, %c0_6, %c0_7] : memref<1x1x1x64x128xbf16, #tpu.memory_space<vmem>>, vector<1x1x1x64x128xbf16>
    %8 = vector.shape_cast %7 : vector<1x1x1x64x128xbf16> to vector<64x128xbf16>
    %cst_8 = arith.constant dense<0.000000e+00> : vector<64x512xf32>
    %9 = tpu.matmul %8, %5, %cst_8 {dimension_numbers = #tpu.dot_dimension_numbers<[1], [0], [0], [1], [0, 0, 1, 1], [], []>} : vector<64x128xbf16>, vector<128x512xbf16>, vector<64x512xf32> -> vector<64x512xf32>
    %cst_9 = arith.constant 0.000000e+00 : f32
    %10 = vector.broadcast %cst_9 : f32 to vector<64x512xf32>
    %11 = arith.maximumf %9, %10 : vector<64x512xf32>
    %cst_10 = arith.constant dense<0.000000e+00> : vector<512xf32>
    %12 = vector.multi_reduction <add>, %11, %cst_10 [0] : vector<64x512xf32> to vector<512xf32>
    %13 = vector.shape_cast %12 : vector<512xf32> to vector<1x512xf32>
    %14 = arith.addf %6, %13 : vector<1x512xf32>
    %15 = vector.extract_strided_slice %14 {offsets = [0, 0], sizes = [1, 128], strides = [1, 1]} : vector<1x512xf32> to vector<1x128xf32>
    %16 = vector.extract_strided_slice %14 {offsets = [0, 128], sizes = [1, 128], strides = [1, 1]} : vector<1x512xf32> to vector<1x128xf32>
    %17 = arith.addf %15, %16 : vector<1x128xf32>
    %18 = vector.extract_strided_slice %14 {offsets = [0, 256], sizes = [1, 128], strides = [1, 1]} : vector<1x512xf32> to vector<1x128xf32>
    %19 = arith.addf %17, %18 : vector<1x128xf32>
    %20 = vector.extract_strided_slice %14 {offsets = [0, 384], sizes = [1, 128], strides = [1, 1]} : vector<1x512xf32> to vector<1x128xf32>
    %21 = arith.addf %19, %20 : vector<1x128xf32>
    %22 = tpu.iota {dimensions = array<i32: 0>} : vector<2x1xi32>
    %23 = vector.broadcast %arg1 : i32 to vector<2x1xi32>
    %24 = arith.cmpi eq, %22, %23 : vector<2x1xi32>
    %c0_11 = arith.constant 0 : index
    %c0_12 = arith.constant 0 : index
    %25 = vector.load %arg8[%c0_11, %c0_12] : memref<2x128xf32, #tpu.memory_space<vmem>>, vector<2x128xf32>
    %26 = arith.extui %24 : vector<2x1xi1> to vector<2x1xi32>
    %27 = arith.sitofp %26 : vector<2x1xi32> to vector<2x1xf32>
    %28 = vector.broadcast %27 : vector<2x1xf32> to vector<2x128xf32>
    %29 = vector.broadcast %21 : vector<1x128xf32> to vector<2x128xf32>
    %30 = arith.mulf %28, %29 : vector<2x128xf32>
    %31 = arith.addf %25, %30 : vector<2x128xf32>
    %c0_13 = arith.constant 0 : index
    %c0_14 = arith.constant 0 : index
    %32 = vector.load %arg8[%c0_13, %c0_14] : memref<2x128xf32, #tpu.memory_space<vmem>>, vector<2x128xf32>
    tpu.vector_store %arg8[%c0_13, %c0_14], %31 {strides = array<i32>} : memref<2x128xf32, #tpu.memory_space<vmem>>, vector<2x128xf32>,
    %c1_i32 = arith.constant 1 : i32
    %33 = arith.cmpi eq, %arg1, %c1_i32 : i32
    %c0_i32_15 = arith.constant 0 : i32
    %34 = arith.cmpi eq, %arg2, %c0_i32_15 : i32
    %35 = arith.andi %33, %34 : i1
    %36 = arith.extui %35 : i1 to i32
    %c0_i32_16 = arith.constant 0 : i32
    %37 = arith.cmpi ne, %36, %c0_i32_16 : i32
    scf.if %37 {
      %c0_17 = arith.constant 0 : index
      %c0_18 = arith.constant 0 : index
      %38 = vector.load %arg8[%c0_17, %c0_18] : memref<2x128xf32, #tpu.memory_space<vmem>>, vector<2x128xf32>
      %cst_19 = arith.constant 3.906250e-03 : f32
      %39 = vector.broadcast %cst_19 : f32 to vector<2x128xf32>
      %40 = arith.mulf %38, %39 : vector<2x128xf32>
      %c0_20 = arith.constant 0 : index
      %c0_21 = arith.constant 0 : index
      %41 = vector.load %arg5[%c0_20, %c0_21] : memref<128x1024xf32, #tpu.memory_space<vmem>>, vector<128x1024xf32>
      %cst_22 = arith.constant dense<0.000000e+00> : vector<2x1024xf32>
      %42 = tpu.matmul %40, %41, %cst_22 {dimension_numbers = #tpu.dot_dimension_numbers<[1], [0], [0], [1], [0, 0, 1, 1], [], []>} : vector<2x128xf32>, vector<128x1024xf32>, vector<2x1024xf32> -> vector<2x1024xf32>
      %c0_23 = arith.constant 0 : index
      %c0_24 = arith.constant 0 : index
      %43 = vector.load %arg6[%c0_23, %c0_24] : memref<1x1024xf32, #tpu.memory_space<vmem>>, vector<1x1024xf32>
      %44 = vector.broadcast %43 : vector<1x1024xf32> to vector<2x1024xf32>
      %45 = arith.addf %42, %44 : vector<2x1024xf32>
      %cst_25 = arith.constant dense<0xFF800000> : vector<2xf32>
      %46 = vector.multi_reduction <maximumf>, %45, %cst_25 [1] : vector<2x1024xf32> to vector<2xf32>
      %47 = vector.shape_cast %46 : vector<2xf32> to vector<2x1xf32>
      %48 = vector.broadcast %47 : vector<2x1xf32> to vector<2x1024xf32>
      %49 = arith.subf %45, %48 : vector<2x1024xf32>
      %50 = math.exp %49 : vector<2x1024xf32>
      %cst_26 = arith.constant dense<0.000000e+00> : vector<2xf32>
      %51 = vector.multi_reduction <add>, %50, %cst_26 [1] : vector<2x1024xf32> to vector<2xf32>
      %52 = vector.shape_cast %51 : vector<2xf32> to vector<2x1xf32>
      %53 = tpu.reciprocal %52 {approx = true} : vector<2x1xf32> -> vector<2x1xf32>
      %54 = arith.mulf %52, %53 : vector<2x1xf32>
      %cst_27 = arith.constant 2.000000e+00 : f32
      %55 = vector.broadcast %cst_27 : f32 to vector<2x1xf32>
      %56 = arith.subf %55, %54 : vector<2x1xf32>
      %57 = arith.mulf %53, %56 : vector<2x1xf32>
      %58 = vector.broadcast %57 : vector<2x1xf32> to vector<2x1024xf32>
      %59 = arith.mulf %50, %58 : vector<2x1024xf32>
      %c0_28 = arith.constant 0 : index
      %c0_29 = arith.constant 0 : index
      %c0_30 = arith.constant 0 : index
      %60 = vector.load %arg7[%c0_28, %c0_29, %c0_30] : memref<1x2x1024xf32, #tpu.memory_space<vmem>>, vector<1x2x1024xf32>
      %61 = vector.shape_cast %60 : vector<1x2x1024xf32> to vector<2x1024xf32>
      %62 = vector.shape_cast %59 : vector<2x1024xf32> to vector<1x2x1024xf32>
      tpu.vector_store %arg7[%c0_28, %c0_29, %c0_30], %62 {strides = array<i32>} : memref<1x2x1024xf32, #tpu.memory_space<vmem>>, vector<1x2x1024xf32>,
    } else {
    }
    return
  }
  func.func @transform_0(%arg0: i32, %arg1: i32, %arg2: i32) -> (i32, i32, i32, i32, i32) {
    %c0_i32 = arith.constant 0 : i32
    %c0_i32_0 = arith.constant 0 : i32
    %c0_i32_1 = arith.constant 0 : i32
    return %arg0, %arg1, %arg2, %c0_i32, %c0_i32_0 : i32, i32, i32, i32, i32
  }
  func.func @transform_1(%arg0: i32, %arg1: i32, %arg2: i32) -> (i32, i32) {
    %c0_i32 = arith.constant 0 : i32
    %c0_i32_0 = arith.constant 0 : i32
    %c0_i32_1 = arith.constant 0 : i32
    return %c0_i32, %c0_i32_0 : i32, i32
  }
  func.func @transform_2(%arg0: i32, %arg1: i32, %arg2: i32) -> (i32, i32) {
    %c0_i32 = arith.constant 0 : i32
    %c0_i32_0 = arith.constant 0 : i32
    %c0_i32_1 = arith.constant 0 : i32
    return %c0_i32, %c0_i32_0 : i32, i32
  }
  func.func @transform_3(%arg0: i32, %arg1: i32, %arg2: i32) -> (i32, i32) {
    %c0_i32 = arith.constant 0 : i32
    %c0_i32_0 = arith.constant 0 : i32
    %c0_i32_1 = arith.constant 0 : i32
    return %c0_i32, %c0_i32_0 : i32, i32
  }
  func.func @transform_4(%arg0: i32, %arg1: i32, %arg2: i32) -> (i32, i32, i32) {
    %c0_i32 = arith.constant 0 : i32
    %c0_i32_0 = arith.constant 0 : i32
    %c0_i32_1 = arith.constant 0 : i32
    return %arg0, %c0_i32, %c0_i32_0 : i32, i32, i32
  }
}

</mosaic_0001>

<llo_original>
// kernel: inception_forward.1
$region0: #{inception_forward.1}
  #allocation0 [shape = 'u32[]', space=smem, size = 0x4, offset = 0x4, fixed_abs, tag = 'smem constant byte address 0x4 - core index']
  #allocation1 [shape = 'u32[144,128]{1,0:T(1,128)}', space=vmem, size = 0x12000, scoped, tag = 'internal scratch']
  #allocation2 [shape = 'f32[2,128]{1,0:T(2,128)}', space=vmem, size = 0x400, scoped, tag = 'scratch operand']
  %s0 = inlined_call_operand.vmem [shape: bf16[1,2,1,64,128], index: 0, kind: input, shape index: {}]
  %s1 = inlined_call_operand.vmem [shape: bf16[128,512], index: 1, kind: input, shape index: {}]
  %s2 = inlined_call_operand.vmem [shape: f32[128,1024], index: 2, kind: input, shape index: {}]
  %s3 = inlined_call_operand.vmem [shape: f32[1,1024], index: 3, kind: input, shape index: {}]
  %s4 = inlined_call_operand.hbm [shape: f32[1,2,1024], index: 4, kind: output, shape index: {}]
  %s5 = sld [smem:[#allocation0]]
  $region57: #{inception_forward.1} parent=0
    _
  %s7 = ssub.s32 1, %s5
  %s8 = scalar_select 0, %s7, %s5
  $region1: #{inception_forward.1} parent=0
    #allocation3 [shape = 'u8[8192]{0}', space=vmem, size = 0x2000, scoped, tag = 'output window, operand 0, single buffered']
    #allocation4 [shape = 's32[2]{0}', space=sflag, size = 0x8, scoped, tag = 'scoped memory for inception_forward.1']
    %9 = vsyncpa [#allocation4], 0
    loop: start=0, step=1, limit=4
    $region2: #{inception_forward.1} parent=1 // loop_pre_header
      _
    $region3: #{inception_forward.1} parent=1 // loop_header
      %s11 = sphi 0, %s15
      %p12 = scmp.ge.s32.totalorder %s11, 4
      %s18 = sphi 0, %s37
      %s19 = sphi 0, %s33
      %s20 = sphi 0, %s29
      %s21 = sphi 0, %s18
      %s22 = sphi 0, %s19
      %s23 = sphi 0, %s20
      %s24 = sphi 0, %s21
      %s25 = sphi 0, %s22
      %s26 = sphi 0, %s23
      %s44 = sphi 0, %s46
      %s47 = sphi 0, %s44
      %s48 = sphi 0, %s47
      %s64 = sphi 0, %s48
      %s68 = sphi 0, %s68
      %s70 = sphi 0, %s68
      %s71 = sphi 0, %s70
      %s85 = sphi 0, %s71
      %s89 = sphi 0, %s89
      %s91 = sphi 0, %s89
      %s92 = sphi 0, %s91
      %s106 = sphi 0, %s92
      %s110 = sphi 0, %s110
      %s112 = sphi 0, %s110
      %s113 = sphi 0, %s112
      %s127 = sphi 0, %s113
      %s133 = sphi 0, %s135
      %s136 = sphi 0, %s133
      %s137 = sphi 0, %s136
      %s153 = sphi 0, %s137
    $region4: #{inception_forward.1} parent=1 // loop_header_branch
      %14 = sbr.rel (%p12) target = $region8
    $region5: #{inception_forward.1} parent=1 // loop_body
      %s16 = ssub.s32 %s11, 1
      %s17 = ssub.s32 %s11, 2
      %s27 = sadd.s32 1, %s20
      %p28 = scmp.ge.s32.totalorder %s27, 1
      %s29 = scalar_select %p28, 0, %s27
      %s30 = sadd.s32 1, %s19
      %s31 = scalar_select %p28, %s30, %s19
      %p32 = scmp.ge.s32.totalorder %s31, 2
      %s33 = scalar_select %p32, 0, %s31
      %s34 = sadd.s32 1, %s18
      %s35 = scalar_select %p32, %s34, %s18
      %p36 = scmp.ge.s32.totalorder %s35, 1
      %s37 = scalar_select %p36, 0, %s35
      %s38 = ssub.s32 %s18, %s37
      %s39 = ssub.s32 %s19, %s33
      %s40 = sor.u32 %s38, %s39
      %s41 = ssub.s32 %s20, %s29
      %s42 = sor.u32 %s40, %s41
      %p43 = scmp.eq.s32.totalorder %s42, 0
      %s45 = sadd.s32 %s44, 1
      %s46 = scalar_select %p43, %s44, %s45
      %p49 = pneg %p43
      %p50 = scmp.eq.s32.totalorder %s11, 1
      %p51 = por %p49, %p50
      %p52 = scmp.ne.s32.totalorder %s44, %s47
      %p53 = scmp.eq.s32.totalorder %s11, 0
      %p54 = por %p52, %p53
      %p55 = scmp.ne.s32.totalorder %s44, %s47
      %p56 = scmp.eq.s32.totalorder %s16, 1
      %p57 = por %p55, %p56
      %p58 = scmp.ne.s32.totalorder %s47, %s48
      %p59 = scmp.eq.s32.totalorder %s16, 0
      %p60 = por %p58, %p59
      %p61 = scmp.ne.s32.totalorder %s47, %s48
      %p62 = scmp.eq.s32.totalorder %s17, 1
      %p63 = por %p61, %p62
      %p65 = scmp.ne.s32.totalorder %s48, %s64
      %p66 = scmp.eq.s32.totalorder %s17, 0
      %p67 = por %p65, %p66
      %s69 = sadd.s32 %s68, 1
      %p72 = scmp.eq.s32.totalorder %s11, 1
      %p73 = scmp.ne.s32.totalorder %s68, %s70
      %p74 = scmp.eq.s32.totalorder %s11, 0
      %p75 = por %p73, %p74
      %p76 = scmp.ne.s32.totalorder %s68, %s70
      %p77 = scmp.eq.s32.totalorder %s16, 1
      %p78 = por %p76, %p77
      %p79 = scmp.ne.s32.totalorder %s70, %s71
      %p80 = scmp.eq.s32.totalorder %s16, 0
      %p81 = por %p79, %p80
      %p82 = scmp.ne.s32.totalorder %s70, %s71
      %p83 = scmp.eq.s32.totalorder %s17, 1
      %p84 = por %p82, %p83
      %p86 = scmp.ne.s32.totalorder %s71, %s85
      %p87 = scmp.eq.s32.totalorder %s17, 0
      %p88 = por %p86, %p87
      %s90 = sadd.s32 %s89, 1
      %p93 = scmp.eq.s32.totalorder %s11, 1
      %p94 = scmp.ne.s32.totalorder %s89, %s91
      %p95 = scmp.eq.s32.totalorder %s11, 0
      %p96 = por %p94, %p95
      %p97 = scmp.ne.s32.totalorder %s89, %s91
      %p98 = scmp.eq.s32.totalorder %s16, 1
      %p99 = por %p97, %p98
      %p100 = scmp.ne.s32.totalorder %s91, %s92
      %p101 = scmp.eq.s32.totalorder %s16, 0
      %p102 = por %p100, %p101
      %p103 = scmp.ne.s32.totalorder %s91, %s92
      %p104 = scmp.eq.s32.totalorder %s17, 1
      %p105 = por %p103, %p104
      %p107 = scmp.ne.s32.totalorder %s92, %s106
      %p108 = scmp.eq.s32.totalorder %s17, 0
      %p109 = por %p107, %p108
      %s111 = sadd.s32 %s110, 1
      %p114 = scmp.eq.s32.totalorder %s11, 1
      %p115 = scmp.ne.s32.totalorder %s110, %s112
      %p116 = scmp.eq.s32.totalorder %s11, 0
      %p117 = por %p115, %p116
      %p118 = scmp.ne.s32.totalorder %s110, %s112
      %p119 = scmp.eq.s32.totalorder %s16, 1
      %p120 = por %p118, %p119
      %p121 = scmp.ne.s32.totalorder %s112, %s113
      %p122 = scmp.eq.s32.totalorder %s16, 0
      %p123 = por %p121, %p122
      %p124 = scmp.ne.s32.totalorder %s112, %s113
      %p125 = scmp.eq.s32.totalorder %s17, 1
      %p126 = por %p124, %p125
      %p128 = scmp.ne.s32.totalorder %s113, %s127
      %p129 = scmp.eq.s32.totalorder %s17, 0
      %p130 = por %p128, %p129
      %s131 = ssub.s32 %s18, %s37
      %p132 = scmp.eq.s32.totalorder %s131, 0
      %s134 = sadd.s32 %s133, 1
      %s135 = scalar_select %p132, %s133, %s134
      %p138 = pneg %p132
      %p139 = scmp.eq.s32.totalorder %s11, 1
      %p140 = por %p138, %p139
      %p141 = scmp.ne.s32.totalorder %s133, %s136
      %p142 = scmp.eq.s32.totalorder %s11, 0
      %p143 = por %p141, %p142
      %p144 = scmp.ne.s32.totalorder %s133, %s136
      %p145 = scmp.eq.s32.totalorder %s16, 1
      %p146 = por %p144, %p145
      %p147 = scmp.ne.s32.totalorder %s136, %s137
      %p148 = scmp.eq.s32.totalorder %s16, 0
      %p149 = por %p147, %p148
      %p150 = scmp.ne.s32.totalorder %s136, %s137
      %p151 = scmp.eq.s32.totalorder %s17, 1
      %p152 = por %p150, %p151
      %p154 = scmp.ne.s32.totalorder %s137, %s153
      %p155 = scmp.eq.s32.totalorder %s17, 0
      %p156 = por %p154, %p155
      %p157 = scmp.le.s32.totalorder 1, %s11
      %p158 = scmp.lt.s32.totalorder %s11, 3
      %p159 = pnand %p157, %p158
      %p160 = pneg %p159
      // Predicated region
      $region9: #{inception_forward.1} parent=5 // pred_check
        _
      $region10: #{inception_forward.1} parent=5 // pred_check_branch
        %162 = sbr.rel (%p159) target = $region12
      $region11: #{inception_forward.1} parent=5 // pred_region
        %s163 = ssub.s32 %s11, 1
        // Predicated region
        $region13: #{inception_forward.1} parent=11 // pred_check
          %p164 = pneg %p81
        $region14: #{inception_forward.1} parent=11 // pred_check_branch
          %166 = sbr.rel (%p164) target = $region16
        $region15: #{inception_forward.1} parent=11 // pred_region
          _
        $region16: #{inception_forward.1} parent=11 // pred_fallthru
          _
        // Predicated region
        $region17: #{inception_forward.1} parent=11 // pred_check
          %p167 = pneg %p102
        $region18: #{inception_forward.1} parent=11 // pred_check_branch
          %169 = sbr.rel (%p167) target = $region20
        $region19: #{inception_forward.1} parent=11 // pred_region
          _
        $region20: #{inception_forward.1} parent=11 // pred_fallthru
          _
        // Predicated region
        $region21: #{inception_forward.1} parent=11 // pred_check
          %p170 = pneg %p123
        $region22: #{inception_forward.1} parent=11 // pred_check_branch
          %172 = sbr.rel (%p170) target = $region24
        $region23: #{inception_forward.1} parent=11 // pred_region
          _
        $region24: #{inception_forward.1} parent=11 // pred_fallthru
          _
      $region12: #{inception_forward.1} parent=5 // pred_fallthru
        _
      %p173 = scmp.lt.s32.totalorder %s11, 2
      // Predicated region
      $region25: #{inception_forward.1} parent=5 // pred_check
        %p174 = pneg %p173
      $region26: #{inception_forward.1} parent=5 // pred_check_branch
        %176 = sbr.rel (%p174) target = $region28
      $region27: #{inception_forward.1} parent=5 // pred_region
        // Predicated region
        $region29: #{inception_forward.1} parent=27 // pred_check
          %p177 = pneg %p54
        $region30: #{inception_forward.1} parent=27 // pred_check_branch
          %179 = sbr.rel (%p177) target = $region32
        $region31: #{inception_forward.1} parent=27 // pred_region
          %p180 = scmp.lt.s32.totalorder %s18, 0
          %s181 = scalar_select %p180, %s18, 0
          %p182 = scmp.lt.s32.totalorder %s19, 1
          %s183 = scalar_select %p182, %s19, 1
          %p184 = scmp.lt.s32.totalorder %s20, 0
          %s185 = scalar_select %p184, %s20, 0
          %s186 = smul.addr %s185, 8
          %s187 = smul.addr %s183, 8
          %s188 = sadd.s32 %s186, %s187
          %s189 = smul.addr %s181, 16
          %s190 = sadd.s32 %s188, %s189
          %s191 = smul.addr %s190, 4
          %s192 = scalar_lea.vmem %s0, %s191
        $region32: #{inception_forward.1} parent=27 // pred_fallthru
          _
      $region28: #{inception_forward.1} parent=5 // pred_fallthru
        _
      %p193 = scmp.le.s32.totalorder 1, %s11
      %p194 = scmp.lt.s32.totalorder %s11, 3
      %p195 = pnand %p193, %p194
      %p196 = pneg %p195
      // Predicated region
      $region33: #{inception_forward.1} parent=5 // pred_check
        _
      $region34: #{inception_forward.1} parent=5 // pred_check_branch
        %198 = sbr.rel (%p195) target = $region36
      $region35: #{inception_forward.1} parent=5 // pred_region
        %s199 = ssub.s32 %s11, 1
        %p200 = scmp.lt.s32.totalorder %s21, 0
        %s201 = scalar_select %p200, %s21, 0
        %p202 = scmp.lt.s32.totalorder %s22, 1
        %s203 = scalar_select %p202, %s22, 1
        %p204 = scmp.lt.s32.totalorder %s23, 0
        %s205 = scalar_select %p204, %s23, 0
        %s206 = smul.addr %s205, 8
        %s207 = smul.addr %s203, 8
        %s208 = sadd.s32 %s206, %s207
        %s209 = smul.addr %s201, 16
        %s210 = sadd.s32 %s208, %s209
        %s211 = smul.addr %s210, 4
        %s212 = scalar_lea.vmem %s0, %s211
        %p213 = pneg %p60
        %p214 = pneg %p57
        %p215 = pneg %p81
        %p216 = pneg %p78
        %p217 = pneg %p102
        %p218 = pneg %p99
        %p219 = pneg %p123
        %p220 = pneg %p120
        %p221 = pneg %p149
        %p222 = pneg %p146
        %p223 = scmp.lt.s32.totalorder %s21, 0
        %s224 = scalar_select %p223, %s21, 0
        %p225 = scmp.lt.s32.totalorder %s22, 1
        %s226 = scalar_select %p225, %s22, 1
        %p227 = scmp.lt.s32.totalorder %s23, 0
        %s228 = scalar_select %p227, %s23, 0
        %s229 = smul.addr %s228, 8
        %s230 = smul.addr %s226, 8
        %s231 = sadd.s32 %s229, %s230
        %s232 = smul.addr %s224, 16
        %s233 = sadd.s32 %s231, %s232
        %s234 = smul.addr %s233, 4
        %s235 = scalar_lea.vmem %s0, %s234
        %p237 = scmp.eq.s32.totalorder %s22, 0
        %p238 = scmp.eq.s32.totalorder %s23, 0
        %p239 = pnand %p237, %p238
        %p240 = pneg %p239
        // Predicated region
        $region37: #{inception_forward.1} parent=35 // pred_check
          _
        $region38: #{inception_forward.1} parent=35 // pred_check_branch
          %242 = sbr.rel (%p239) target = $region40
        $region39: #{inception_forward.1} parent=35 // pred_region
          %243 = vst [vmem:[#allocation2] sm:$0x3] 0.0
        $region40: #{inception_forward.1} parent=35 // pred_fallthru
          _
        %v244 = vld [vmem:[%s1] sm:$0xff]
        %v245 = vld [vmem:[%s1 + $0x8] sm:$0xff]
        %v246 = vld [vmem:[%s1 + $0x10] sm:$0xff]
        %v247 = vld [vmem:[%s1 + $0x18] sm:$0xff]
        %v248 = vld [vmem:[%s1 + $0x20] sm:$0xff]
        %v249 = vld [vmem:[%s1 + $0x28] sm:$0xff]
        %v250 = vld [vmem:[%s1 + $0x30] sm:$0xff]
        %v251 = vld [vmem:[%s1 + $0x38] sm:$0xff]
        %v252 = vld [vmem:[%s1 + $0x40] sm:$0xff]
        %v253 = vld [vmem:[%s1 + $0x48] sm:$0xff]
        %v254 = vld [vmem:[%s1 + $0x50] sm:$0xff]
        %v255 = vld [vmem:[%s1 + $0x58] sm:$0xff]
        %v256 = vld [vmem:[%s1 + $0x60] sm:$0xff]
        %v257 = vld [vmem:[%s1 + $0x68] sm:$0xff]
        %v258 = vld [vmem:[%s1 + $0x70] sm:$0xff]
        %v259 = vld [vmem:[%s1 + $0x78] sm:$0xff]
        %v260 = vld [vmem:[%s1 + $0x80] sm:$0xff]
        %v261 = vld [vmem:[%s1 + $0x88] sm:$0xff]
        %v262 = vld [vmem:[%s1 + $0x90] sm:$0xff]
        %v263 = vld [vmem:[%s1 + $0x98] sm:$0xff]
        %v264 = vld [vmem:[%s1 + $0xa0] sm:$0xff]
        %v265 = vld [vmem:[%s1 + $0xa8] sm:$0xff]
        %v266 = vld [vmem:[%s1 + $0xb0] sm:$0xff]
        %v267 = vld [vmem:[%s1 + $0xb8] sm:$0xff]
        %v268 = vld [vmem:[%s1 + $0xc0] sm:$0xff]
        %v269 = vld [vmem:[%s1 + $0xc8] sm:$0xff]
        %v270 = vld [vmem:[%s1 + $0xd0] sm:$0xff]
        %v271 = vld [vmem:[%s1 + $0xd8] sm:$0xff]
        %v272 = vld [vmem:[%s1 + $0xe0] sm:$0xff]
        %v273 = vld [vmem:[%s1 + $0xe8] sm:$0xff]
        %v274 = vld [vmem:[%s1 + $0xf0] sm:$0xff]
        %v275 = vld [vmem:[%s1 + $0xf8] sm:$0xff]
        %v276 = vld [vmem:[%s235] sm:$0xf]
        %v277 = vld [vmem:[%s235 + $0x4] sm:$0xf]
        %v278 = vld [vmem:[%s235 + $0x8] sm:$0xf]
        %v279 = vld [vmem:[%s235 + $0xc] sm:$0xf]
        %v280 = vld [vmem:[%s235 + $0x10] sm:$0xf]
        %v281 = vld [vmem:[%s235 + $0x14] sm:$0xf]
        %v282 = vld [vmem:[%s235 + $0x18] sm:$0xf]
        %v283 = vld [vmem:[%s235 + $0x1c] sm:$0xf]
        %v292 = vunpack.c.l.b16 %v276
        %v293 = vunpack.c.l.b16 %v277
        %v294 = vunpack.c.l.b16 %v278
        %v295 = vunpack.c.l.b16 %v279
        %v296 = vunpack.c.l.b16 %v280
        %v297 = vunpack.c.l.b16 %v281
        %v298 = vunpack.c.l.b16 %v282
        %v299 = vunpack.c.l.b16 %v283
        %v300 = vpack.c.b16 %v293, %v292
        %v301 = vpack.c.b16 %v295, %v294
        %v302 = vpack.c.b16 %v297, %v296
        %v303 = vpack.c.b16 %v299, %v298
        %v340 = vunpack.c.l.b16 %v244
        %v341 = vunpack.c.h.b16 %v244
        %v342 = vunpack.c.l.b16 %v245
        %v343 = vunpack.c.h.b16 %v245
        %v344 = vunpack.c.l.b16 %v246
        %v345 = vunpack.c.h.b16 %v246
        %v346 = vunpack.c.l.b16 %v247
        %v347 = vunpack.c.h.b16 %v247
        %v348 = vunpack.c.l.b16 %v248
        %v349 = vunpack.c.h.b16 %v248
        %v350 = vunpack.c.l.b16 %v249
        %v351 = vunpack.c.h.b16 %v249
        %v352 = vunpack.c.l.b16 %v250
        %v353 = vunpack.c.h.b16 %v250
        %v354 = vunpack.c.l.b16 %v251
        %v355 = vunpack.c.h.b16 %v251
        %v356 = vunpack.c.l.b16 %v252
        %v357 = vunpack.c.h.b16 %v252
        %v358 = vunpack.c.l.b16 %v253
        %v359 = vunpack.c.h.b16 %v253
        %v360 = vunpack.c.l.b16 %v254
        %v361 = vunpack.c.h.b16 %v254
        %v362 = vunpack.c.l.b16 %v255
        %v363 = vunpack.c.h.b16 %v255
        %v364 = vunpack.c.l.b16 %v256
        %v365 = vunpack.c.h.b16 %v256
        %v366 = vunpack.c.l.b16 %v257
        %v367 = vunpack.c.h.b16 %v257
        %v368 = vunpack.c.l.b16 %v258
        %v369 = vunpack.c.h.b16 %v258
        %v370 = vunpack.c.l.b16 %v259
        %v371 = vunpack.c.h.b16 %v259
        %v372 = vunpack.c.l.b16 %v260
        %v373 = vunpack.c.h.b16 %v260
        %v374 = vunpack.c.l.b16 %v261
        %v375 = vunpack.c.h.b16 %v261
        %v376 = vunpack.c.l.b16 %v262
        %v377 = vunpack.c.h.b16 %v262
        %v378 = vunpack.c.l.b16 %v263
        %v379 = vunpack.c.h.b16 %v263
        %v380 = vunpack.c.l.b16 %v264
        %v381 = vunpack.c.h.b16 %v264
        %v382 = vunpack.c.l.b16 %v265
        %v383 = vunpack.c.h.b16 %v265
        %v384 = vunpack.c.l.b16 %v266
        %v385 = vunpack.c.h.b16 %v266
        %v386 = vunpack.c.l.b16 %v267
        %v387 = vunpack.c.h.b16 %v267
        %v388 = vunpack.c.l.b16 %v268
        %v389 = vunpack.c.h.b16 %v268
        %v390 = vunpack.c.l.b16 %v269
        %v391 = vunpack.c.h.b16 %v269
        %v392 = vunpack.c.l.b16 %v270
        %v393 = vunpack.c.h.b16 %v270
        %v394 = vunpack.c.l.b16 %v271
        %v395 = vunpack.c.h.b16 %v271
        %v396 = vunpack.c.l.b16 %v272
        %v397 = vunpack.c.h.b16 %v272
        %v398 = vunpack.c.l.b16 %v273
        %v399 = vunpack.c.h.b16 %v273
        %v400 = vunpack.c.l.b16 %v274
        %v401 = vunpack.c.h.b16 %v274
        %v402 = vunpack.c.l.b16 %v275
        %v403 = vunpack.c.h.b16 %v275
        %v404 = vpack.c.b16 %v344, %v340
        %v405 = vpack.c.b16 %v345, %v341
        %v406 = vpack.c.b16 %v346, %v342
        %v407 = vpack.c.b16 %v347, %v343
        %v408 = vpack.c.b16 %v352, %v348
        %v409 = vpack.c.b16 %v353, %v349
        %v410 = vpack.c.b16 %v354, %v350
        %v411 = vpack.c.b16 %v355, %v351
        %v412 = vpack.c.b16 %v360, %v356
        %v413 = vpack.c.b16 %v361, %v357
        %v414 = vpack.c.b16 %v362, %v358
        %v415 = vpack.c.b16 %v363, %v359
        %v416 = vpack.c.b16 %v368, %v364
        %v417 = vpack.c.b16 %v369, %v365
        %v418 = vpack.c.b16 %v370, %v366
        %v419 = vpack.c.b16 %v371, %v367
        %v420 = vpack.c.b16 %v376, %v372
        %v421 = vpack.c.b16 %v377, %v373
        %v422 = vpack.c.b16 %v378, %v374
        %v423 = vpack.c.b16 %v379, %v375
        %v424 = vpack.c.b16 %v384, %v380
        %v425 = vpack.c.b16 %v385, %v381
        %v426 = vpack.c.b16 %v386, %v382
        %v427 = vpack.c.b16 %v387, %v383
        %v428 = vpack.c.b16 %v392, %v388
        %v429 = vpack.c.b16 %v393, %v389
        %v430 = vpack.c.b16 %v394, %v390
        %v431 = vpack.c.b16 %v395, %v391
        %v432 = vpack.c.b16 %v400, %v396
        %v433 = vpack.c.b16 %v401, %v397
        %v434 = vpack.c.b16 %v402, %v398
        %v435 = vpack.c.b16 %v403, %v399
        %468 = vmatprep.subr.bf16.mxu0 %v405
        %469 = vmatpush1.bf16.msra.mxu0 %v404
        %470 = vmatprep.subr.bf16.mxu0 %v409
        %471 = vmatpush1.bf16.msra.mxu0 %v408
        %472 = vmatprep.subr.bf16.mxu0 %v413
        %473 = vmatpush1.bf16.msra.mxu0 %v412
        %474 = vmatprep.subr.bf16.mxu0 %v417
        %475 = vmatpush1.bf16.msra.mxu0 %v416
        %476 = vmatprep.subr.bf16.mxu0 %v421
        %477 = vmatpush1.bf16.msra.mxu0 %v420
        %478 = vmatprep.subr.bf16.mxu0 %v425
        %479 = vmatpush1.bf16.msra.mxu0 %v424
        %480 = vmatprep.subr.bf16.mxu0 %v429
        %481 = vmatpush1.bf16.msra.mxu0 %v428
        %482 = vmatprep.subr.bf16.mxu0 %v433
        %483 = vmatpush1.bf16.msra.mxu0 %v432
        %484 = vmatprep.subr.bf16.mxu0 0
        %485 = vmatpush1.bf16.msra.mxu0 0
        %486 = vmatprep.subr.bf16.mxu0 0
        %487 = vmatpush1.bf16.msra.mxu0 0
        %488 = vmatprep.subr.bf16.mxu0 0
        %489 = vmatpush1.bf16.msra.mxu0 0
        %490 = vmatprep.subr.bf16.mxu0 0
        %491 = vmatpush1.bf16.msra.mxu0 0
        %492 = vmatprep.subr.bf16.mxu0 0
        %493 = vmatpush1.bf16.msra.mxu0 0
        %494 = vmatprep.subr.bf16.mxu0 0
        %495 = vmatpush1.bf16.msra.mxu0 0
        %496 = vmatprep.subr.bf16.mxu0 0
        %497 = vmatpush1.bf16.msra.mxu0 0
        %498 = vmatprep.subr.bf16.mxu0 0
        %499 = vmatpush1.bf16.msra.mxu0 0
        %500 = vmatprep.mubr.bf16.mxu0 0
        %501 = vmatmul.mubr.bf16.gmra.mrb[0].mxu0 %v300
        %v502 = vpop.f32.mrb[0].mxu0
        %v503 = vadd.f32 0.0, %v502
        %v504 = vpop.f32.mrb[0].mxu0
        %v505 = vadd.f32 0.0, %v504
        %v506 = vpop.f32.mrb[0].mxu0
        %v507 = vadd.f32 0.0, %v506
        %v508 = vpop.f32.mrb[0].mxu0
        %v509 = vadd.f32 0.0, %v508
        %510 = vmatprep.mubr.bf16.mxu0 0
        %511 = vmatmul.mubr.bf16.gmra.mrb[0].mxu0 %v301
        %v512 = vpop.f32.mrb[0].mxu0
        %v513 = vadd.f32 0.0, %v512
        %v514 = vpop.f32.mrb[0].mxu0
        %v515 = vadd.f32 0.0, %v514
        %v516 = vpop.f32.mrb[0].mxu0
        %v517 = vadd.f32 0.0, %v516
        %v518 = vpop.f32.mrb[0].mxu0
        %v519 = vadd.f32 0.0, %v518
        %520 = vmatprep.mubr.bf16.mxu0 0
        %521 = vmatmul.mubr.bf16.gmra.mrb[0].mxu0 %v302
        %v522 = vpop.f32.mrb[0].mxu0
        %v523 = vadd.f32 0.0, %v522
        %v524 = vpop.f32.mrb[0].mxu0
        %v525 = vadd.f32 0.0, %v524
        %v526 = vpop.f32.mrb[0].mxu0
        %v527 = vadd.f32 0.0, %v526
        %v528 = vpop.f32.mrb[0].mxu0
        %v529 = vadd.f32 0.0, %v528
        %530 = vmatprep.mubr.bf16.mxu0 0
        %531 = vmatmul.mubr.bf16.gmra.mrb[0].mxu0 %v303
        %v532 = vpop.f32.mrb[0].mxu0
        %v533 = vadd.f32 0.0, %v532
        %v534 = vpop.f32.mrb[0].mxu0
        %v535 = vadd.f32 0.0, %v534
        %v536 = vpop.f32.mrb[0].mxu0
        %v537 = vadd.f32 0.0, %v536
        %v538 = vpop.f32.mrb[0].mxu0
        %v539 = vadd.f32 0.0, %v538
        %540 = vdwg.mxu0
        %541 = vmatprep.subr.bf16.mxu0 %v407
        %542 = vmatpush1.bf16.msra.mxu0 %v406
        %543 = vmatprep.subr.bf16.mxu0 %v411
        %544 = vmatpush1.bf16.msra.mxu0 %v410
        %545 = vmatprep.subr.bf16.mxu0 %v415
        %546 = vmatpush1.bf16.msra.mxu0 %v414
        %547 = vmatprep.subr.bf16.mxu0 %v419
        %548 = vmatpush1.bf16.msra.mxu0 %v418
        %549 = vmatprep.subr.bf16.mxu0 %v423
        %550 = vmatpush1.bf16.msra.mxu0 %v422
        %551 = vmatprep.subr.bf16.mxu0 %v427
        %552 = vmatpush1.bf16.msra.mxu0 %v426
        %553 = vmatprep.subr.bf16.mxu0 %v431
        %554 = vmatpush1.bf16.msra.mxu0 %v430
        %555 = vmatprep.subr.bf16.mxu0 %v435
        %556 = vmatpush1.bf16.msra.mxu0 %v434
        %557 = vmatprep.subr.bf16.mxu0 0
        %558 = vmatpush1.bf16.msra.mxu0 0
        %559 = vmatprep.subr.bf16.mxu0 0
        %560 = vmatpush1.bf16.msra.mxu0 0
        %561 = vmatprep.subr.bf16.mxu0 0
        %562 = vmatpush1.bf16.msra.mxu0 0
        %563 = vmatprep.subr.bf16.mxu0 0
        %564 = vmatpush1.bf16.msra.mxu0 0
        %565 = vmatprep.subr.bf16.mxu0 0
        %566 = vmatpush1.bf16.msra.mxu0 0
        %567 = vmatprep.subr.bf16.mxu0 0
        %568 = vmatpush1.bf16.msra.mxu0 0
        %569 = vmatprep.subr.bf16.mxu0 0
        %570 = vmatpush1.bf16.msra.mxu0 0
        %571 = vmatprep.subr.bf16.mxu0 0
        %572 = vmatpush1.bf16.msra.mxu0 0
        %573 = vmatprep.mubr.bf16.mxu0 0
        %574 = vmatmul.mubr.bf16.gmra.mrb[0].mxu0 %v300
        %v575 = vpop.f32.mrb[0].mxu0
        %v576 = vadd.f32 0.0, %v575
        %v577 = vpop.f32.mrb[0].mxu0
        %v578 = vadd.f32 0.0, %v577
        %v579 = vpop.f32.mrb[0].mxu0
        %v580 = vadd.f32 0.0, %v579
        %v581 = vpop.f32.mrb[0].mxu0
        %v582 = vadd.f32 0.0, %v581
        %583 = vmatprep.mubr.bf16.mxu0 0
        %584 = vmatmul.mubr.bf16.gmra.mrb[0].mxu0 %v301
        %v585 = vpop.f32.mrb[0].mxu0
        %v586 = vadd.f32 0.0, %v585
        %v587 = vpop.f32.mrb[0].mxu0
        %v588 = vadd.f32 0.0, %v587
        %v589 = vpop.f32.mrb[0].mxu0
        %v590 = vadd.f32 0.0, %v589
        %v591 = vpop.f32.mrb[0].mxu0
        %v592 = vadd.f32 0.0, %v591
        %593 = vmatprep.mubr.bf16.mxu0 0
        %594 = vmatmul.mubr.bf16.gmra.mrb[0].mxu0 %v302
        %v595 = vpop.f32.mrb[0].mxu0
        %v596 = vadd.f32 0.0, %v595
        %v597 = vpop.f32.mrb[0].mxu0
        %v598 = vadd.f32 0.0, %v597
        %v599 = vpop.f32.mrb[0].mxu0
        %v600 = vadd.f32 0.0, %v599
        %v601 = vpop.f32.mrb[0].mxu0
        %v602 = vadd.f32 0.0, %v601
        %603 = vmatprep.mubr.bf16.mxu0 0
        %604 = vmatmul.mubr.bf16.gmra.mrb[0].mxu0 %v303
        %v605 = vpop.f32.mrb[0].mxu0
        %v606 = vadd.f32 0.0, %v605
        %v607 = vpop.f32.mrb[0].mxu0
        %v608 = vadd.f32 0.0, %v607
        %v609 = vpop.f32.mrb[0].mxu0
        %v610 = vadd.f32 0.0, %v609
        %v611 = vpop.f32.mrb[0].mxu0
        %v612 = vadd.f32 0.0, %v611
        %613 = vdwg.mxu0
        %v614 = vmax.f32 %v503, 0.0
        %v615 = vmax.f32 %v505, 0.0
        %v616 = vmax.f32 %v576, 0.0
        %v617 = vmax.f32 %v578, 0.0
        %v618 = vmax.f32 %v507, 0.0
        %v619 = vmax.f32 %v509, 0.0
        %v620 = vmax.f32 %v580, 0.0
        %v621 = vmax.f32 %v582, 0.0
        %v622 = vmax.f32 %v513, 0.0
        %v623 = vmax.f32 %v515, 0.0
        %v624 = vmax.f32 %v586, 0.0
        %v625 = vmax.f32 %v588, 0.0
        %v626 = vmax.f32 %v517, 0.0
        %v627 = vmax.f32 %v519, 0.0
        %v628 = vmax.f32 %v590, 0.0
        %v629 = vmax.f32 %v592, 0.0
        %v630 = vmax.f32 %v523, 0.0
        %v631 = vmax.f32 %v525, 0.0
        %v632 = vmax.f32 %v596, 0.0
        %v633 = vmax.f32 %v598, 0.0
        %v634 = vmax.f32 %v527, 0.0
        %v635 = vmax.f32 %v529, 0.0
        %v636 = vmax.f32 %v600, 0.0
        %v637 = vmax.f32 %v602, 0.0
        %v638 = vmax.f32 %v533, 0.0
        %v639 = vmax.f32 %v535, 0.0
        %v640 = vmax.f32 %v606, 0.0
        %v641 = vmax.f32 %v608, 0.0
        %v642 = vmax.f32 %v537, 0.0
        %v643 = vmax.f32 %v539, 0.0
        %v644 = vmax.f32 %v610, 0.0
        %v645 = vmax.f32 %v612, 0.0
        %v646 = vadd.f32 %v614, %v618
        %v647 = vadd.f32 %v646, %v622
        %v648 = vadd.f32 %v647, %v626
        %v649 = vadd.f32 %v648, %v630
        %v650 = vadd.f32 %v649, %v634
        %v651 = vadd.f32 %v650, %v638
        %v652 = vadd.f32 %v651, %v642
        %v653 = vrot.slane %v652, 4
        %v654 = vadd.f32 %v652, %v653
        %v655 = vrot.slane %v654, 2
        %v656 = vadd.f32 %v654, %v655
        %v657 = vrot.slane %v656, 1
        %v658 = vadd.f32 %v656, %v657
        %v659 = vadd.f32 %v615, %v619
        %v660 = vadd.f32 %v659, %v623
        %v661 = vadd.f32 %v660, %v627
        %v662 = vadd.f32 %v661, %v631
        %v663 = vadd.f32 %v662, %v635
        %v664 = vadd.f32 %v663, %v639
        %v665 = vadd.f32 %v664, %v643
        %v666 = vrot.slane %v665, 4
        %v667 = vadd.f32 %v665, %v666
        %v668 = vrot.slane %v667, 2
        %v669 = vadd.f32 %v667, %v668
        %v670 = vrot.slane %v669, 1
        %v671 = vadd.f32 %v669, %v670
        %v672 = vadd.f32 %v616, %v620
        %v673 = vadd.f32 %v672, %v624
        %v674 = vadd.f32 %v673, %v628
        %v675 = vadd.f32 %v674, %v632
        %v676 = vadd.f32 %v675, %v636
        %v677 = vadd.f32 %v676, %v640
        %v678 = vadd.f32 %v677, %v644
        %v679 = vrot.slane %v678, 4
        %v680 = vadd.f32 %v678, %v679
        %v681 = vrot.slane %v680, 2
        %v682 = vadd.f32 %v680, %v681
        %v683 = vrot.slane %v682, 1
        %v684 = vadd.f32 %v682, %v683
        %v685 = vadd.f32 %v617, %v621
        %v686 = vadd.f32 %v685, %v625
        %v687 = vadd.f32 %v686, %v629
        %v688 = vadd.f32 %v687, %v633
        %v689 = vadd.f32 %v688, %v637
        %v690 = vadd.f32 %v689, %v641
        %v691 = vadd.f32 %v690, %v645
        %v692 = vrot.slane %v691, 4
        %v693 = vadd.f32 %v691, %v692
        %v694 = vrot.slane %v693, 2
        %v695 = vadd.f32 %v693, %v694
        %v696 = vrot.slane %v695, 1
        %v697 = vadd.f32 %v695, %v696
        %v698 = vadd.f32 %v658, 0.0
        %v699 = vadd.f32 %v671, 0.0
        %v700 = vadd.f32 %v684, 0.0
        %v701 = vadd.f32 %v697, 0.0
        %v702 = vadd.f32 %v698, %v699
        %v703 = vadd.f32 %v702, %v700
        %v704 = vadd.f32 %v703, %v701
        %v705 = vlaneseq
        %v706 = vshrl.u32 %v705, 7
        %v707 = vstv %s22
        %vm708 = vcmp.eq.s32.totalorder %v706, %v707
        %v709 = vld [vmem:[#allocation2] sm:$0x3]
        %v710 = vsel %vm708, 1, 0
        %v711 = vcvt.s32.f32 %v710
        %v712 = vmul.f32 %v711, %v704
        %v713 = vadd.f32 %v709, %v712
        %714 = vst [vmem:[#allocation2] sm:$0x3] %v713
        %p715 = scmp.eq.s32.totalorder %s22, 1
        %p716 = pnand %p715, %p238
        %p717 = pneg %p716
        // Predicated region
        $region41: #{inception_forward.1} parent=35 // pred_check
          _
        $region42: #{inception_forward.1} parent=35 // pred_check_branch
          %719 = sbr.rel (%p716) target = $region44
        $region43: #{inception_forward.1} parent=35 // pred_region
          %v720 = vld [vmem:[#allocation2] sm:$0x3]
          %v721 = vmul.f32 %v720, 0.00390625
          %v722 = vld [vmem:[%s2] sm:$0xff]
          %v723 = vld [vmem:[%s2 + $0x8] sm:$0xff]
          %v724 = vld [vmem:[%s2 + $0x10] sm:$0xff]
          %v725 = vld [vmem:[%s2 + $0x18] sm:$0xff]
          %v726 = vld [vmem:[%s2 + $0x20] sm:$0xff]
          %v727 = vld [vmem:[%s2 + $0x28] sm:$0xff]
          %v728 = vld [vmem:[%s2 + $0x30] sm:$0xff]
          %v729 = vld [vmem:[%s2 + $0x38] sm:$0xff]
          %v730 = vld [vmem:[%s2 + $0x40] sm:$0xff]
          %v731 = vld [vmem:[%s2 + $0x48] sm:$0xff]
          %v732 = vld [vmem:[%s2 + $0x50] sm:$0xff]
          %v733 = vld [vmem:[%s2 + $0x58] sm:$0xff]
          %v734 = vld [vmem:[%s2 + $0x60] sm:$0xff]
          %v735 = vld [vmem:[%s2 + $0x68] sm:$0xff]
          %v736 = vld [vmem:[%s2 + $0x70] sm:$0xff]
          %v737 = vld [vmem:[%s2 + $0x78] sm:$0xff]
          %v738 = vld [vmem:[%s2 + $0x80] sm:$0xff]
          %v739 = vld [vmem:[%s2 + $0x88] sm:$0xff]
          %v740 = vld [vmem:[%s2 + $0x90] sm:$0xff]
          %v741 = vld [vmem:[%s2 + $0x98] sm:$0xff]
          %v742 = vld [vmem:[%s2 + $0xa0] sm:$0xff]
          %v743 = vld [vmem:[%s2 + $0xa8] sm:$0xff]
          %v744 = vld [vmem:[%s2 + $0xb0] sm:$0xff]
          %v745 = vld [vmem:[%s2 + $0xb8] sm:$0xff]
          %v746 = vld [vmem:[%s2 + $0xc0] sm:$0xff]
          %v747 = vld [vmem:[%s2 + $0xc8] sm:$0xff]
          %v748 = vld [vmem:[%s2 + $0xd0] sm:$0xff]
          %v749 = vld [vmem:[%s2 + $0xd8] sm:$0xff]
          %v750 = vld [vmem:[%s2 + $0xe0] sm:$0xff]
          %v751 = vld [vmem:[%s2 + $0xe8] sm:$0xff]
          %v752 = vld [vmem:[%s2 + $0xf0] sm:$0xff]
          %v753 = vld [vmem:[%s2 + $0xf8] sm:$0xff]
          %v754 = vld [vmem:[%s2 + $0x100] sm:$0xff]
          %v755 = vld [vmem:[%s2 + $0x108] sm:$0xff]
          %v756 = vld [vmem:[%s2 + $0x110] sm:$0xff]
          %v757 = vld [vmem:[%s2 + $0x118] sm:$0xff]
          %v758 = vld [vmem:[%s2 + $0x120] sm:$0xff]
          %v759 = vld [vmem:[%s2 + $0x128] sm:$0xff]
          %v760 = vld [vmem:[%s2 + $0x130] sm:$0xff]
          %v761 = vld [vmem:[%s2 + $0x138] sm:$0xff]
          %v762 = vld [vmem:[%s2 + $0x140] sm:$0xff]
          %v763 = vld [vmem:[%s2 + $0x148] sm:$0xff]
          %v764 = vld [vmem:[%s2 + $0x150] sm:$0xff]
          %v765 = vld [vmem:[%s2 + $0x158] sm:$0xff]
          %v766 = vld [vmem:[%s2 + $0x160] sm:$0xff]
          %v767 = vld [vmem:[%s2 + $0x168] sm:$0xff]
          %v768 = vld [vmem:[%s2 + $0x170] sm:$0xff]
          %v769 = vld [vmem:[%s2 + $0x178] sm:$0xff]
          %v770 = vld [vmem:[%s2 + $0x180] sm:$0xff]
          %v771 = vld [vmem:[%s2 + $0x188] sm:$0xff]
          %v772 = vld [vmem:[%s2 + $0x190] sm:$0xff]
          %v773 = vld [vmem:[%s2 + $0x198] sm:$0xff]
          %v774 = vld [vmem:[%s2 + $0x1a0] sm:$0xff]
          %v775 = vld [vmem:[%s2 + $0x1a8] sm:$0xff]
          %v776 = vld [vmem:[%s2 + $0x1b0] sm:$0xff]
          %v777 = vld [vmem:[%s2 + $0x1b8] sm:$0xff]
          %v778 = vld [vmem:[%s2 + $0x1c0] sm:$0xff]
          %v779 = vld [vmem:[%s2 + $0x1c8] sm:$0xff]
          %v780 = vld [vmem:[%s2 + $0x1d0] sm:$0xff]
          %v781 = vld [vmem:[%s2 + $0x1d8] sm:$0xff]
          %v782 = vld [vmem:[%s2 + $0x1e0] sm:$0xff]
          %v783 = vld [vmem:[%s2 + $0x1e8] sm:$0xff]
          %v784 = vld [vmem:[%s2 + $0x1f0] sm:$0xff]
          %v785 = vld [vmem:[%s2 + $0x1f8] sm:$0xff]
          %v786 = vld [vmem:[%s2 + $0x200] sm:$0xff]
          %v787 = vld [vmem:[%s2 + $0x208] sm:$0xff]
          %v788 = vld [vmem:[%s2 + $0x210] sm:$0xff]
          %v789 = vld [vmem:[%s2 + $0x218] sm:$0xff]
          %v790 = vld [vmem:[%s2 + $0x220] sm:$0xff]
          %v791 = vld [vmem:[%s2 + $0x228] sm:$0xff]
          %v792 = vld [vmem:[%s2 + $0x230] sm:$0xff]
          %v793 = vld [vmem:[%s2 + $0x238] sm:$0xff]
          %v794 = vld [vmem:[%s2 + $0x240] sm:$0xff]
          %v795 = vld [vmem:[%s2 + $0x248] sm:$0xff]
          %v796 = vld [vmem:[%s2 + $0x250] sm:$0xff]
          %v797 = vld [vmem:[%s2 + $0x258] sm:$0xff]
          %v798 = vld [vmem:[%s2 + $0x260] sm:$0xff]
          %v799 = vld [vmem:[%s2 + $0x268] sm:$0xff]
          %v800 = vld [vmem:[%s2 + $0x270] sm:$0xff]
          %v801 = vld [vmem:[%s2 + $0x278] sm:$0xff]
          %v802 = vld [vmem:[%s2 + $0x280] sm:$0xff]
          %v803 = vld [vmem:[%s2 + $0x288] sm:$0xff]
          %v804 = vld [vmem:[%s2 + $0x290] sm:$0xff]
          %v805 = vld [vmem:[%s2 + $0x298] sm:$0xff]
          %v806 = vld [vmem:[%s2 + $0x2a0] sm:$0xff]
          %v807 = vld [vmem:[%s2 + $0x2a8] sm:$0xff]
          %v808 = vld [vmem:[%s2 + $0x2b0] sm:$0xff]
          %v809 = vld [vmem:[%s2 + $0x2b8] sm:$0xff]
          %v810 = vld [vmem:[%s2 + $0x2c0] sm:$0xff]
          %v811 = vld [vmem:[%s2 + $0x2c8] sm:$0xff]
          %v812 = vld [vmem:[%s2 + $0x2d0] sm:$0xff]
          %v813 = vld [vmem:[%s2 + $0x2d8] sm:$0xff]
          %v814 = vld [vmem:[%s2 + $0x2e0] sm:$0xff]
          %v815 = vld [vmem:[%s2 + $0x2e8] sm:$0xff]
          %v816 = vld [vmem:[%s2 + $0x2f0] sm:$0xff]
          %v817 = vld [vmem:[%s2 + $0x2f8] sm:$0xff]
          %v818 = vld [vmem:[%s2 + $0x300] sm:$0xff]
          %v819 = vld [vmem:[%s2 + $0x308] sm:$0xff]
          %v820 = vld [vmem:[%s2 + $0x310] sm:$0xff]
          %v821 = vld [vmem:[%s2 + $0x318] sm:$0xff]
          %v822 = vld [vmem:[%s2 + $0x320] sm:$0xff]
          %v823 = vld [vmem:[%s2 + $0x328] sm:$0xff]
          %v824 = vld [vmem:[%s2 + $0x330] sm:$0xff]
          %v825 = vld [vmem:[%s2 + $0x338] sm:$0xff]
          %v826 = vld [vmem:[%s2 + $0x340] sm:$0xff]
          %v827 = vld [vmem:[%s2 + $0x348] sm:$0xff]
          %v828 = vld [vmem:[%s2 + $0x350] sm:$0xff]
          %v829 = vld [vmem:[%s2 + $0x358] sm:$0xff]
          %v830 = vld [vmem:[%s2 + $0x360] sm:$0xff]
          %v831 = vld [vmem:[%s2 + $0x368] sm:$0xff]
          %v832 = vld [vmem:[%s2 + $0x370] sm:$0xff]
          %v833 = vld [vmem:[%s2 + $0x378] sm:$0xff]
          %v834 = vld [vmem:[%s2 + $0x380] sm:$0xff]
          %v835 = vld [vmem:[%s2 + $0x388] sm:$0xff]
          %v836 = vld [vmem:[%s2 + $0x390] sm:$0xff]
          %v837 = vld [vmem:[%s2 + $0x398] sm:$0xff]
          %v838 = vld [vmem:[%s2 + $0x3a0] sm:$0xff]
          %v839 = vld [vmem:[%s2 + $0x3a8] sm:$0xff]
          %v840 = vld [vmem:[%s2 + $0x3b0] sm:$0xff]
          %v841 = vld [vmem:[%s2 + $0x3b8] sm:$0xff]
          %v842 = vld [vmem:[%s2 + $0x3c0] sm:$0xff]
          %v843 = vld [vmem:[%s2 + $0x3c8] sm:$0xff]
          %v844 = vld [vmem:[%s2 + $0x3d0] sm:$0xff]
          %v845 = vld [vmem:[%s2 + $0x3d8] sm:$0xff]
          %v846 = vld [vmem:[%s2 + $0x3e0] sm:$0xff]
          %v847 = vld [vmem:[%s2 + $0x3e8] sm:$0xff]
          %v848 = vld [vmem:[%s2 + $0x3f0] sm:$0xff]
          %v849 = vld [vmem:[%s2 + $0x3f8] sm:$0xff]
          %v850 = vld [vmem:[%s3] sm:$0xff]
          %v852 = vlaneseq
          %v853 = vshrl.u32 %v852, 7
          %v854 = vsub.s32 0, %v853
          %v855 = vrot.slane %v850, %v854
          %v856 = vlaneseq
          %v857 = vshrl.u32 %v856, 7
          %v858 = vsub.s32 1, %v857
          %v859 = vrot.slane %v850, %v858
          %v860 = vlaneseq
          %v861 = vshrl.u32 %v860, 7
          %v862 = vsub.s32 2, %v861
          %v863 = vrot.slane %v850, %v862
          %v864 = vlaneseq
          %v865 = vshrl.u32 %v864, 7
          %v866 = vsub.s32 3, %v865
          %v867 = vrot.slane %v850, %v866
          %v868 = vlaneseq
          %v869 = vshrl.u32 %v868, 7
          %v870 = vsub.s32 4, %v869
          %v871 = vrot.slane %v850, %v870
          %v872 = vlaneseq
          %v873 = vshrl.u32 %v872, 7
          %v874 = vsub.s32 5, %v873
          %v875 = vrot.slane %v850, %v874
          %v876 = vlaneseq
          %v877 = vshrl.u32 %v876, 7
          %v878 = vsub.s32 6, %v877
          %v879 = vrot.slane %v850, %v878
          %v880 = vlaneseq
          %v881 = vshrl.u32 %v880, 7
          %v882 = vsub.s32 7, %v881
          %v883 = vrot.slane %v850, %v882
          %892 = vmatprep.subr.mxu0 %v723
          %893 = vmatpush1.msra.mxu0 %v722
          %894 = vmatprep.subr.mxu0 %v731
          %895 = vmatpush1.msra.mxu0 %v730
          %896 = vmatprep.subr.mxu0 %v739
          %897 = vmatpush1.msra.mxu0 %v738
          %898 = vmatprep.subr.mxu0 %v747
          %899 = vmatpush1.msra.mxu0 %v746
          %900 = vmatprep.subr.mxu0 %v755
          %901 = vmatpush1.msra.mxu0 %v754
          %902 = vmatprep.subr.mxu0 %v763
          %903 = vmatpush1.msra.mxu0 %v762
          %904 = vmatprep.subr.mxu0 %v771
          %905 = vmatpush1.msra.mxu0 %v770
          %906 = vmatprep.subr.mxu0 %v779
          %907 = vmatpush1.msra.mxu0 %v778
          %908 = vmatprep.subr.mxu0 %v787
          %909 = vmatpush1.msra.mxu0 %v786
          %910 = vmatprep.subr.mxu0 %v795
          %911 = vmatpush1.msra.mxu0 %v794
          %912 = vmatprep.subr.mxu0 %v803
          %913 = vmatpush1.msra.mxu0 %v802
          %914 = vmatprep.subr.mxu0 %v811
          %915 = vmatpush1.msra.mxu0 %v810
          %916 = vmatprep.subr.mxu0 %v819
          %917 = vmatpush1.msra.mxu0 %v818
          %918 = vmatprep.subr.mxu0 %v827
          %919 = vmatpush1.msra.mxu0 %v826
          %920 = vmatprep.subr.mxu0 %v835
          %921 = vmatpush1.msra.mxu0 %v834
          %922 = vmatprep.subr.mxu0 %v843
          %923 = vmatpush1.msra.mxu0 %v842
          %924 = vmatprep.subr.mxu0 0.0
          %925 = vmatpush1.msra.mxu0 0.0
          %926 = vmatprep.subr.mxu0 0.0
          %927 = vmatpush1.msra.mxu0 0.0
          %928 = vmatprep.subr.mxu0 0.0
          %929 = vmatpush1.msra.mxu0 0.0
          %930 = vmatprep.subr.mxu0 0.0
          %931 = vmatpush1.msra.mxu0 0.0
          %932 = vmatprep.subr.mxu0 0.0
          %933 = vmatpush1.msra.mxu0 0.0
          %934 = vmatprep.subr.mxu0 0.0
          %935 = vmatpush1.msra.mxu0 0.0
          %936 = vmatprep.subr.mxu0 0.0
          %937 = vmatpush1.msra.mxu0 0.0
          %938 = vmatprep.subr.mxu0 0.0
          %939 = vmatpush1.msra.mxu0 0.0
          %940 = vmatprep.subr.mxu0 0.0
          %941 = vmatpush1.msra.mxu0 0.0
          %942 = vmatprep.subr.mxu0 0.0
          %943 = vmatpush1.msra.mxu0 0.0
          %944 = vmatprep.subr.mxu0 0.0
          %945 = vmatpush1.msra.mxu0 0.0
          %946 = vmatprep.subr.mxu0 0.0
          %947 = vmatpush1.msra.mxu0 0.0
          %948 = vmatprep.subr.mxu0 0.0
          %949 = vmatpush1.msra.mxu0 0.0
          %950 = vmatprep.subr.mxu0 0.0
          %951 = vmatpush1.msra.mxu0 0.0
          %952 = vmatprep.subr.mxu0 0.0
          %953 = vmatpush1.msra.mxu0 0.0
          %954 = vmatprep.subr.mxu0 0.0
          %955 = vmatpush1.msra.mxu0 0.0
          %956 = vmatprep.mubr.f32.mxu0 0.0
          %957 = vmatmul.mubr.f32.gmra.mrb[0].mxu0 %v721
          %v958 = vpop.f32.mrb[0].mxu0
          %v959 = vadd.f32 %v855, %v958
          %v960 = vpop.f32.mrb[0].mxu0
          %v961 = vadd.f32 %v859, %v960
          %962 = vdwg.mxu0
          %963 = vmatprep.subr.mxu0 %v725
          %964 = vmatpush1.msra.mxu0 %v724
          %965 = vmatprep.subr.mxu0 %v733
          %966 = vmatpush1.msra.mxu0 %v732
          %967 = vmatprep.subr.mxu0 %v741
          %968 = vmatpush1.msra.mxu0 %v740
          %969 = vmatprep.subr.mxu0 %v749
          %970 = vmatpush1.msra.mxu0 %v748
          %971 = vmatprep.subr.mxu0 %v757
          %972 = vmatpush1.msra.mxu0 %v756
          %973 = vmatprep.subr.mxu0 %v765
          %974 = vmatpush1.msra.mxu0 %v764
          %975 = vmatprep.subr.mxu0 %v773
          %976 = vmatpush1.msra.mxu0 %v772
          %977 = vmatprep.subr.mxu0 %v781
          %978 = vmatpush1.msra.mxu0 %v780
          %979 = vmatprep.subr.mxu0 %v789
          %980 = vmatpush1.msra.mxu0 %v788
          %981 = vmatprep.subr.mxu0 %v797
          %982 = vmatpush1.msra.mxu0 %v796
          %983 = vmatprep.subr.mxu0 %v805
          %984 = vmatpush1.msra.mxu0 %v804
          %985 = vmatprep.subr.mxu0 %v813
          %986 = vmatpush1.msra.mxu0 %v812
          %987 = vmatprep.subr.mxu0 %v821
          %988 = vmatpush1.msra.mxu0 %v820
          %989 = vmatprep.subr.mxu0 %v829
          %990 = vmatpush1.msra.mxu0 %v828
          %991 = vmatprep.subr.mxu0 %v837
          %992 = vmatpush1.msra.mxu0 %v836
          %993 = vmatprep.subr.mxu0 %v845
          %994 = vmatpush1.msra.mxu0 %v844
          %995 = vmatprep.subr.mxu0 0.0
          %996 = vmatpush1.msra.mxu0 0.0
          %997 = vmatprep.subr.mxu0 0.0
          %998 = vmatpush1.msra.mxu0 0.0
          %999 = vmatprep.subr.mxu0 0.0
          %1000 = vmatpush1.msra.mxu0 0.0
          %1001 = vmatprep.subr.mxu0 0.0
          %1002 = vmatpush1.msra.mxu0 0.0
          %1003 = vmatprep.subr.mxu0 0.0
          %1004 = vmatpush1.msra.mxu0 0.0
          %1005 = vmatprep.subr.mxu0 0.0
          %1006 = vmatpush1.msra.mxu0 0.0
          %1007 = vmatprep.subr.mxu0 0.0
          %1008 = vmatpush1.msra.mxu0 0.0
          %1009 = vmatprep.subr.mxu0 0.0
          %1010 = vmatpush1.msra.mxu0 0.0
          %1011 = vmatprep.subr.mxu0 0.0
          %1012 = vmatpush1.msra.mxu0 0.0
          %1013 = vmatprep.subr.mxu0 0.0
          %1014 = vmatpush1.msra.mxu0 0.0
          %1015 = vmatprep.subr.mxu0 0.0
          %1016 = vmatpush1.msra.mxu0 0.0
          %1017 = vmatprep.subr.mxu0 0.0
          %1018 = vmatpush1.msra.mxu0 0.0
          %1019 = vmatprep.subr.mxu0 0.0
          %1020 = vmatpush1.msra.mxu0 0.0
          %1021 = vmatprep.subr.mxu0 0.0
          %1022 = vmatpush1.msra.mxu0 0.0
          %1023 = vmatprep.subr.mxu0 0.0
          %1024 = vmatpush1.msra.mxu0 0.0
          %1025 = vmatprep.subr.mxu0 0.0
          %1026 = vmatpush1.msra.mxu0 0.0
          %1027 = vmatprep.mubr.f32.mxu0 0.0
          %1028 = vmatmul.mubr.f32.gmra.mrb[0].mxu0 %v721
          %v1029 = vpop.f32.mrb[0].mxu0
          %v1030 = vadd.f32 %v863, %v1029
          %v1031 = vpop.f32.mrb[0].mxu0
          %v1032 = vadd.f32 %v867, %v1031
          %1033 = vdwg.mxu0
          %1034 = vmatprep.subr.mxu0 %v727
          %1035 = vmatpush1.msra.mxu0 %v726
          %1036 = vmatprep.subr.mxu0 %v735
          %1037 = vmatpush1.msra.mxu0 %v734
          %1038 = vmatprep.subr.mxu0 %v743
          %1039 = vmatpush1.msra.mxu0 %v742
          %1040 = vmatprep.subr.mxu0 %v751
          %1041 = vmatpush1.msra.mxu0 %v750
          %1042 = vmatprep.subr.mxu0 %v759
          %1043 = vmatpush1.msra.mxu0 %v758
          %1044 = vmatprep.subr.mxu0 %v767
          %1045 = vmatpush1.msra.mxu0 %v766
          %1046 = vmatprep.subr.mxu0 %v775
          %1047 = vmatpush1.msra.mxu0 %v774
          %1048 = vmatprep.subr.mxu0 %v783
          %1049 = vmatpush1.msra.mxu0 %v782
          %1050 = vmatprep.subr.mxu0 %v791
          %1051 = vmatpush1.msra.mxu0 %v790
          %1052 = vmatprep.subr.mxu0 %v799
          %1053 = vmatpush1.msra.mxu0 %v798
          %1054 = vmatprep.subr.mxu0 %v807
          %1055 = vmatpush1.msra.mxu0 %v806
          %1056 = vmatprep.subr.mxu0 %v815
          %1057 = vmatpush1.msra.mxu0 %v814
          %1058 = vmatprep.subr.mxu0 %v823
          %1059 = vmatpush1.msra.mxu0 %v822
          %1060 = vmatprep.subr.mxu0 %v831
          %1061 = vmatpush1.msra.mxu0 %v830
          %1062 = vmatprep.subr.mxu0 %v839
          %1063 = vmatpush1.msra.mxu0 %v838
          %1064 = vmatprep.subr.mxu0 %v847
          %1065 = vmatpush1.msra.mxu0 %v846
          %1066 = vmatprep.subr.mxu0 0.0
          %1067 = vmatpush1.msra.mxu0 0.0
          %1068 = vmatprep.subr.mxu0 0.0
          %1069 = vmatpush1.msra.mxu0 0.0
          %1070 = vmatprep.subr.mxu0 0.0
          %1071 = vmatpush1.msra.mxu0 0.0
          %1072 = vmatprep.subr.mxu0 0.0
          %1073 = vmatpush1.msra.mxu0 0.0
          %1074 = vmatprep.subr.mxu0 0.0
          %1075 = vmatpush1.msra.mxu0 0.0
          %1076 = vmatprep.subr.mxu0 0.0
          %1077 = vmatpush1.msra.mxu0 0.0
          %1078 = vmatprep.subr.mxu0 0.0
          %1079 = vmatpush1.msra.mxu0 0.0
          %1080 = vmatprep.subr.mxu0 0.0
          %1081 = vmatpush1.msra.mxu0 0.0
          %1082 = vmatprep.subr.mxu0 0.0
          %1083 = vmatpush1.msra.mxu0 0.0
          %1084 = vmatprep.subr.mxu0 0.0
          %1085 = vmatpush1.msra.mxu0 0.0
          %1086 = vmatprep.subr.mxu0 0.0
          %1087 = vmatpush1.msra.mxu0 0.0
          %1088 = vmatprep.subr.mxu0 0.0
          %1089 = vmatpush1.msra.mxu0 0.0
          %1090 = vmatprep.subr.mxu0 0.0
          %1091 = vmatpush1.msra.mxu0 0.0
          %1092 = vmatprep.subr.mxu0 0.0
          %1093 = vmatpush1.msra.mxu0 0.0
          %1094 = vmatprep.subr.mxu0 0.0
          %1095 = vmatpush1.msra.mxu0 0.0
          %1096 = vmatprep.subr.mxu0 0.0
          %1097 = vmatpush1.msra.mxu0 0.0
          %1098 = vmatprep.mubr.f32.mxu0 0.0
          %1099 = vmatmul.mubr.f32.gmra.mrb[0].mxu0 %v721
          %v1100 = vpop.f32.mrb[0].mxu0
          %v1101 = vadd.f32 %v871, %v1100
          %v1102 = vpop.f32.mrb[0].mxu0
          %v1103 = vadd.f32 %v875, %v1102
          %1104 = vdwg.mxu0
          %1105 = vmatprep.subr.mxu0 %v729
          %1106 = vmatpush1.msra.mxu0 %v728
          %1107 = vmatprep.subr.mxu0 %v737
          %1108 = vmatpush1.msra.mxu0 %v736
          %1109 = vmatprep.subr.mxu0 %v745
          %1110 = vmatpush1.msra.mxu0 %v744
          %1111 = vmatprep.subr.mxu0 %v753
          %1112 = vmatpush1.msra.mxu0 %v752
          %1113 = vmatprep.subr.mxu0 %v761
          %1114 = vmatpush1.msra.mxu0 %v760
          %1115 = vmatprep.subr.mxu0 %v769
          %1116 = vmatpush1.msra.mxu0 %v768
          %1117 = vmatprep.subr.mxu0 %v777
          %1118 = vmatpush1.msra.mxu0 %v776
          %1119 = vmatprep.subr.mxu0 %v785
          %1120 = vmatpush1.msra.mxu0 %v784
          %1121 = vmatprep.subr.mxu0 %v793
          %1122 = vmatpush1.msra.mxu0 %v792
          %1123 = vmatprep.subr.mxu0 %v801
          %1124 = vmatpush1.msra.mxu0 %v800
          %1125 = vmatprep.subr.mxu0 %v809
          %1126 = vmatpush1.msra.mxu0 %v808
          %1127 = vmatprep.subr.mxu0 %v817
          %1128 = vmatpush1.msra.mxu0 %v816
          %1129 = vmatprep.subr.mxu0 %v825
          %1130 = vmatpush1.msra.mxu0 %v824
          %1131 = vmatprep.subr.mxu0 %v833
          %1132 = vmatpush1.msra.mxu0 %v832
          %1133 = vmatprep.subr.mxu0 %v841
          %1134 = vmatpush1.msra.mxu0 %v840
          %1135 = vmatprep.subr.mxu0 %v849
          %1136 = vmatpush1.msra.mxu0 %v848
          %1137 = vmatprep.subr.mxu0 0.0
          %1138 = vmatpush1.msra.mxu0 0.0
          %1139 = vmatprep.subr.mxu0 0.0
          %1140 = vmatpush1.msra.mxu0 0.0
          %1141 = vmatprep.subr.mxu0 0.0
          %1142 = vmatpush1.msra.mxu0 0.0
          %1143 = vmatprep.subr.mxu0 0.0
          %1144 = vmatpush1.msra.mxu0 0.0
          %1145 = vmatprep.subr.mxu0 0.0
          %1146 = vmatpush1.msra.mxu0 0.0
          %1147 = vmatprep.subr.mxu0 0.0
          %1148 = vmatpush1.msra.mxu0 0.0
          %1149 = vmatprep.subr.mxu0 0.0
          %1150 = vmatpush1.msra.mxu0 0.0
          %1151 = vmatprep.subr.mxu0 0.0
          %1152 = vmatpush1.msra.mxu0 0.0
          %1153 = vmatprep.subr.mxu0 0.0
          %1154 = vmatpush1.msra.mxu0 0.0
          %1155 = vmatprep.subr.mxu0 0.0
          %1156 = vmatpush1.msra.mxu0 0.0
          %1157 = vmatprep.subr.mxu0 0.0
          %1158 = vmatpush1.msra.mxu0 0.0
          %1159 = vmatprep.subr.mxu0 0.0
          %1160 = vmatpush1.msra.mxu0 0.0
          %1161 = vmatprep.subr.mxu0 0.0
          %1162 = vmatpush1.msra.mxu0 0.0
          %1163 = vmatprep.subr.mxu0 0.0
          %1164 = vmatpush1.msra.mxu0 0.0
          %1165 = vmatprep.subr.mxu0 0.0
          %1166 = vmatpush1.msra.mxu0 0.0
          %1167 = vmatprep.subr.mxu0 0.0
          %1168 = vmatpush1.msra.mxu0 0.0
          %1169 = vmatprep.mubr.f32.mxu0 0.0
          %1170 = vmatmul.mubr.f32.gmra.mrb[0].mxu0 %v721
          %v1171 = vpop.f32.mrb[0].mxu0
          %v1172 = vadd.f32 %v879, %v1171
          %v1173 = vpop.f32.mrb[0].mxu0
          %v1174 = vadd.f32 %v883, %v1173
          %1175 = vdwg.mxu0
          %vm1176 = vcmask 1041408
          %v1177 = vsel %vm1176, %v959, -inf
          %v1178 = vsel %vm1176, %v961, -inf
          %v1179 = vsel %vm1176, %v1030, -inf
          %v1180 = vsel %vm1176, %v1032, -inf
          %v1181 = vsel %vm1176, %v1101, -inf
          %v1182 = vmax.f32 %v1177, %v1181
          %v1183 = vsel %vm1176, %v1103, -inf
          %v1184 = vmax.f32 %v1178, %v1183
          %v1185 = vsel %vm1176, %v1172, -inf
          %v1186 = vmax.f32 %v1179, %v1185
          %v1187 = vsel %vm1176, %v1174, -inf
          %v1188 = vmax.f32 %v1180, %v1187
          %v1189 = vmax.f32 %v1182, %v1184
          %v1190 = vmax.f32 %v1186, %v1188
          %v1191 = vmax.f32 %v1189, %v1190
          %1192 = vmax.xlane.f32.xlu0 %v1191
          %v1193 = vpop.xlane.xlu0 %1192
          %v1194 = vsub.f32 %v959, %v1193
          %v1195 = vsub.f32 %v961, %v1193
          %v1196 = vsub.f32 %v1030, %v1193
          %v1197 = vsub.f32 %v1032, %v1193
          %v1198 = vsub.f32 %v1101, %v1193
          %v1199 = vsub.f32 %v1103, %v1193
          %v1200 = vsub.f32 %v1172, %v1193
          %v1201 = vsub.f32 %v1174, %v1193
          %v1202 = vmul.f32 %v1194, 1.442695
          %v1203 = vpow.pop %v1202
          %v1204 = vmul.f32 %v1195, 1.442695
          %v1205 = vpow.pop %v1204
          %v1206 = vmul.f32 %v1196, 1.442695
          %v1207 = vpow.pop %v1206
          %v1208 = vmul.f32 %v1197, 1.442695
          %v1209 = vpow.pop %v1208
          %v1210 = vmul.f32 %v1198, 1.442695
          %v1211 = vpow.pop %v1210
          %v1212 = vmul.f32 %v1199, 1.442695
          %v1213 = vpow.pop %v1212
          %v1214 = vmul.f32 %v1200, 1.442695
          %v1215 = vpow.pop %v1214
          %v1216 = vmul.f32 %v1201, 1.442695
          %v1217 = vpow.pop %v1216
          %v1218 = vsel %vm1176, %v1203, 0.0
          %v1219 = vsel %vm1176, %v1205, 0.0
          %v1220 = vadd.f32 %v1218, %v1219
          %v1221 = vsel %vm1176, %v1207, 0.0
          %v1222 = vadd.f32 %v1220, %v1221
          %v1223 = vsel %vm1176, %v1209, 0.0
          %v1224 = vadd.f32 %v1222, %v1223
          %v1225 = vsel %vm1176, %v1211, 0.0
          %v1226 = vadd.f32 %v1224, %v1225
          %v1227 = vsel %vm1176, %v1213, 0.0
          %v1228 = vadd.f32 %v1226, %v1227
          %v1229 = vsel %vm1176, %v1215, 0.0
          %v1230 = vadd.f32 %v1228, %v1229
          %v1231 = vsel %vm1176, %v1217, 0.0
          %v1232 = vadd.f32 %v1230, %v1231
          %1233 = vadd.xlane.f32.xlu0 %v1232
          %v1234 = vpop.xlane.xlu0 %1233
          %v1235 = vrcp.pop %v1234
          %v1236 = vmul.f32 %v1234, %v1235
          %v1237 = vsub.f32 2.0, %v1236
          %v1238 = vmul.f32 %v1235, %v1237
          %v1239 = vmul.f32 %v1203, %v1238
          %v1240 = vmul.f32 %v1205, %v1238
          %v1241 = vmul.f32 %v1207, %v1238
          %v1242 = vmul.f32 %v1209, %v1238
          %v1243 = vmul.f32 %v1211, %v1238
          %v1244 = vmul.f32 %v1213, %v1238
          %v1245 = vmul.f32 %v1215, %v1238
          %v1246 = vmul.f32 %v1217, %v1238
          %v1255 = vcombine.low %v1239, %v1240
          %v1256 = vcombine.low %v1241, %v1242
          %v1258 = vunpack.c.l.s4 1983009808
          %v1259 = vunpack.c.0.s8 %v1258
          %v1260 = vlaneseq
          %v1261 = vshrl.u32 %v1260, 7
          %v1262 = vsub.s32 %v1259, %v1261
          %v1263 = vrot.slane %v1255, %v1262
          %v1265 = vunpack.c.l.s4 1983009808
          %v1266 = vunpack.c.0.s8 %v1265
          %v1267 = vlaneseq
          %v1268 = vshrl.u32 %v1267, 7
          %v1269 = vsub.s32 %v1266, %v1268
          %v1270 = vrot.slane %v1256, %v1269
          %v1271 = vcombine.low %v1263, %v1270
          %v1272 = vcombine.low %v1243, %v1244
          %v1273 = vcombine.low %v1245, %v1246
          %v1275 = vunpack.c.l.s4 1983009808
          %v1276 = vunpack.c.0.s8 %v1275
          %v1277 = vlaneseq
          %v1278 = vshrl.u32 %v1277, 7
          %v1279 = vsub.s32 %v1276, %v1278
          %v1280 = vrot.slane %v1272, %v1279
          %v1282 = vunpack.c.l.s4 1983009808
          %v1283 = vunpack.c.0.s8 %v1282
          %v1284 = vlaneseq
          %v1285 = vshrl.u32 %v1284, 7
          %v1286 = vsub.s32 %v1283, %v1285
          %v1287 = vrot.slane %v1273, %v1286
          %v1288 = vcombine.low %v1280, %v1287
          %1291 = vst [vmem:[#allocation3] sm:$0xff] %v1271
          %1292 = vst [vmem:[#allocation3 + $0x8] sm:$0xff] %v1288
        $region44: #{inception_forward.1} parent=35 // pred_fallthru
          _
        // Predicated region
        $region45: #{inception_forward.1} parent=35 // pred_check
          %p1293 = pneg %p146
        $region46: #{inception_forward.1} parent=35 // pred_check_branch
          %1295 = sbr.rel (%p1293) target = $region48
        $region47: #{inception_forward.1} parent=35 // pred_region
          %s1297 = ssub.s32 256, 256
          %1298 = vsyncadd [#allocation4], %s1297
          %s1299 = smul.addr %s21, 8
          %s1300 = smul.addr %s1299, 32
          %s1301 = scalar_lea.hbm %s4, %s1300
          %s1303 = sshll.u32 [#allocation3], 4
          %s1304 = int_to_ptr.vmem [resolvable:$true] %s1303
          %1306 = dma.vmem_to_hbm [thread:$0]  %s1304, 256, %s1301, [#allocation4]
        $region48: #{inception_forward.1} parent=35 // pred_fallthru
          _
        // Predicated region
        $region49: #{inception_forward.1} parent=35 // pred_check
          %p1307 = pneg %p146
        $region50: #{inception_forward.1} parent=35 // pred_check_branch
          %1309 = sbr.rel (%p1307) target = $region52
        $region51: #{inception_forward.1} parent=35 // pred_region
          %1310 = dma.done [#allocation4], 256
        $region52: #{inception_forward.1} parent=35 // pred_fallthru
          _
      $region36: #{inception_forward.1} parent=5 // pred_fallthru
        _
      %p1311 = scmp.le.s32.totalorder 2, %s11
      // Predicated region
      $region53: #{inception_forward.1} parent=5 // pred_check
        %p1312 = pneg %p1311
      $region54: #{inception_forward.1} parent=5 // pred_check_branch
        %1314 = sbr.rel (%p1312) target = $region56
      $region55: #{inception_forward.1} parent=5 // pred_region
        %s1315 = ssub.s32 %s11, 2
      $region56: #{inception_forward.1} parent=5 // pred_fallthru
        _
    $region6: #{inception_forward.1} parent=1 // loop_footer
      %s15 = sadd.s32 1, %s11
    $region7: #{inception_forward.1} parent=1 // loop_footer_branch
      %10 = sbr.rel target = $region3
    $region8: #{inception_forward.1} parent=1 // loop_exit
      _
    %1316 = vsyncpa [#allocation4], 1
    %s1317 = scalar_lea.sflag [#allocation4], 1
    %1318 = vsyncpa %s1317, 1

</llo_original>
